<compile_context>
chip_gen: v5e
topology: v5e:2x2
jax: 0.10.0
libtpu: 0.0.40
codegen_flags: <defaults>
</compile_context>

<pallas_src>
import functools

import jax
import jax.numpy as jnp
from jax import lax
from jax.experimental import pallas as pl
from jax.experimental.pallas import tpu as pltpu


def _eos_kernel(x_ref, wcat_ref, w2_ref, a_ref, lnw_ref, lnb_ref, wo_ref, out_ref,
                h_scr, inter_scr, iv_scr, es_scr, y_scr, *, off_h, off_e, off_s):
    T, D = inter_scr.shape
    K = a_ref.shape[0]
    S = w2_ref.shape[0]

    # Reset the carried recurrent state at the first chunk of every sequence.
    @pl.when(pl.program_id(1) == 0)
    def _init_state():
        h_scr[...] = jnp.zeros_like(h_scr)

    # ---- fused bf16 MXU projection: [i | inter_hidden | e | s] ----
    # (segments start on 128-lane boundaries so the slices below are aligned)
    x = x_ref[0].astype(jnp.bfloat16)                                      # (T, D)
    proj = jnp.dot(x, wcat_ref[...], preferred_element_type=jnp.float32)   # (T, P) f32
    i_raw = proj[:, :D]                                                    # i_proj(x)
    hidden = proj[:, off_h:off_h + S]                                      # inter_proj[0](x)
    e_seg = proj[:, off_e:off_e + K]                                       # e_proj(x)
    s_seg = proj[:, off_s:off_s + K]                                       # s_proj(x)

    inter = jax.nn.softplus(
        jnp.dot(hidden.astype(jnp.bfloat16), w2_ref[...],
                preferred_element_type=jnp.float32))                       # (T, D) f32

    inter_scr[...] = inter
    iv_scr[...] = inter * i_raw                         # i = inter * i_proj(x)
    es_scr[...] = jnp.concatenate([e_seg, s_seg], axis=-1)                 # (T, 2K)

    a_kd = a_ref[...]                                   # f_di = -exp(o), (K, D) f32

    # ---- serial scan, processed in sublane groups of 8 timesteps ----
    def group(g, h):
        t0 = pl.multiple_of(g * 8, 8)
        inter_t = inter_scr[pl.ds(t0, 8), :]                               # (8, D)
        iv_t = iv_scr[pl.ds(t0, 8), :]                                     # (8, D)
        est = es_scr[pl.ds(t0, 8), :].T                                    # (2K, 8)
        y_rows = []
        for r in range(8):                                                 # static unroll
            # decay gate on the EUP: f = exp(f_di * inter_t)
            f = jnp.exp(inter_t[r:r + 1, :] * a_kd)                        # (K, D)
            e_col = est[:K, r:r + 1]                                       # (K, 1)
            s_col = est[K:, r:r + 1]                                       # (K, 1)
            h = f * h + e_col * iv_t[r:r + 1, :]                           # (K, D)
            # y_t = sum_k s_t[k] * h[k, :]   (VPU multiply + sublane reduce)
            y_rows.append(jnp.sum(s_col * h, axis=0, keepdims=True))       # (1, D)
        y_scr[pl.ds(t0, 8), :] = jnp.concatenate(y_rows, axis=0)           # (8, D)
        return h

    h_scr[...] = lax.fori_loop(0, T // 8, group, h_scr[...])

    # ---- LayerNorm over D + bf16 output projection on the whole (T, D) slab ----
    y = y_scr[...]
    mu = jnp.mean(y, axis=-1, keepdims=True)
    var = jnp.mean(jnp.square(y - mu), axis=-1, keepdims=True)
    yn = (y - mu) * lax.rsqrt(var + 1e-5)
    yn = yn * lnw_ref[...] + lnb_ref[...]
    out_ref[0] = jnp.dot(yn.astype(jnp.bfloat16), wo_ref[...],
                         preferred_element_type=jnp.float32).astype(out_ref.dtype)


def _tpu_budget():
    """(max_chunk, vmem_limit_bytes) chosen per TPU generation."""
    try:
        cap = pltpu.get_tpu_info().vmem_capacity_bytes
    except Exception:
        cap = 0
    if cap > 64 * 1024 * 1024:            # v5e / v6e: 128 MiB physical VMEM
        return 256, 64 * 1024 * 1024
    return 128, 48 * 1024 * 1024          # v7x (64 MiB / TC) or unknown: conservative


def _pick_chunk(n, max_chunk):
    c = min(n, max_chunk)
    c -= c % 8
    while c >= 8 and n % c:
        c -= 8
    if c < 8:
        raise ValueError("seq_len must admit a chunk that is a multiple of 8")
    return c


def eos_layer_forward(x, params, *, chunk=None):
    B, N, D = x.shape
    S = params["w1_t"].shape[1]
    K = params["we_t"].shape[1]

    max_chunk, vmem_limit = _tpu_budget()
    if chunk is None:
        chunk = _pick_chunk(N, max_chunk)
    if N % chunk != 0 or chunk % 8 != 0:
        raise ValueError("chunk must divide the sequence length and be a multiple of 8")
    n_chunks = N // chunk

    # Fused projection weights, each segment padded to a 128-lane boundary:
    # [ i_proj | inter_proj[0] | e_proj | s_proj ]
    lane = 128
    rup = lambda v: ((v + lane - 1) // lane) * lane
    off_h = rup(D)
    off_e = off_h + rup(S)
    off_s = off_e + rup(K)
    P = off_s + rup(K)

    w_cat = jnp.zeros((D, P), jnp.float32)
    w_cat = w_cat.at[:, :D].set(params["wi_t"])
    w_cat = w_cat.at[:, off_h:off_h + S].set(params["w1_t"])
    w_cat = w_cat.at[:, off_e:off_e + K].set(params["we_t"])
    w_cat = w_cat.at[:, off_s:off_s + K].set(params["ws_t"])
    w_cat = w_cat.astype(jnp.bfloat16)
    w2 = params["w2_t"].astype(jnp.bfloat16)
    wo = params["wo_t"].astype(jnp.bfloat16)
    a_kd = -jnp.exp(params["o_kd"].astype(jnp.float32))       # f_di, (K, D) f32

    kernel = functools.partial(_eos_kernel, off_h=off_h, off_e=off_e, off_s=off_s)

    return pl.pallas_call(
        kernel,
        out_shape=jax.ShapeDtypeStruct((B, N, D), jnp.float32),
        grid_spec=pltpu.PrefetchScalarGridSpec(
            num_scalar_prefetch=0,
            grid=(B, n_chunks),
            in_specs=[
                pl.BlockSpec((1, chunk, D), lambda b, c: (b, c, 0)),   # x chunk
                pl.BlockSpec((D, P), lambda b, c: (0, 0)),             # fused proj (bf16)
                pl.BlockSpec((S, D), lambda b, c: (0, 0)),             # inter_proj[1]^T (bf16)
                pl.BlockSpec((K, D), lambda b, c: (0, 0)),             # f_di = -exp(o)
                pl.BlockSpec((1, D), lambda b, c: (0, 0)),             # LayerNorm weight
                pl.BlockSpec((1, D), lambda b, c: (0, 0)),             # LayerNorm bias
                pl.BlockSpec((D, D), lambda b, c: (0, 0)),             # output_proj^T (bf16)
            ],
            out_specs=pl.BlockSpec((1, chunk, D), lambda b, c: (b, c, 0)),
            scratch_shapes=[
                pltpu.VMEM((K, D), jnp.float32),          # h, carried across chunks
                pltpu.VMEM((chunk, D), jnp.float32),      # inter (softplus output)
                pltpu.VMEM((chunk, D), jnp.float32),      # inter * i_proj(x)
                pltpu.VMEM((chunk, 2 * K), jnp.float32),  # [e | s] rows
                pltpu.VMEM((chunk, D), jnp.float32),      # y (pre-norm)
            ],
        ),
        compiler_params=pltpu.CompilerParams(
            dimension_semantics=("parallel", "arbitrary"),
            vmem_limit_bytes=vmem_limit,
        ),
    )(x, w_cat, w2, a_kd, params["ln_w"], params["ln_b"], wo)


def init_params(key, D, K, S):
    ks = jax.random.split(key, 6)

    def lin_t(k, fan_in, fan_out):
        # nn.Linear-style uniform init, stored pre-transposed: y = x @ W_t
        bound = 1.0 / (fan_in ** 0.5)
        return jax.random.uniform(k, (fan_in, fan_out), jnp.float32, -bound, bound)

    return dict(
        wi_t=lin_t(ks[0], D, D),
        w1_t=lin_t(ks[1], D, S),
        w2_t=lin_t(ks[2], S, D),
        we_t=lin_t(ks[3], D, K),
        ws_t=lin_t(ks[4], D, K),
        wo_t=lin_t(ks[5], D, D),
        # self.o = log(arange(1..K)) broadcast over D (default c_type=0 init);
        # kept as the full learned (K, D) parameter so a trained `o` is honored.
        o_kd=jnp.log(jnp.broadcast_to(
            jnp.arange(1, K + 1, dtype=jnp.float32)[:, None], (K, D))),
        ln_w=jnp.ones((1, D), jnp.float32),
        ln_b=jnp.zeros((1, D), jnp.float32),
    )


def eos_layer_reference(x, p, mxu_dtype=jnp.float32):
    """Pure-JAX reference of the EosLayer (c_type=0) forward pass.

    `mxu_dtype=jnp.bfloat16` mirrors the kernel's bf16-matmul / f32-accumulate
    precision so the comparison isolates the kernel logic from the MXU cast.
    """
    def mm(a, w):
        return jnp.dot(a.astype(mxu_dtype), w.astype(mxu_dtype),
                       preferred_element_type=jnp.float32)

    i = mm(x, p["wi_t"])
    inter = jax.nn.softplus(mm(mm(x, p["w1_t"]), p["w2_t"]))
    i = inter * i
    e = mm(x, p["we_t"])
    s = mm(x, p["ws_t"])
    f_di = -jnp.exp(p["o_kd"])                                    # (K, D)
    f = jnp.exp(jnp.einsum("bnd,kd->bnkd", inter, f_di))          # (B, N, K, D)
    ei = e[..., None] * i[:, :, None, :]                          # (B, N, K, D)

    def step(h, inp):
        ft, eit, st = inp
        h = ft * h + eit
        return h, st @ h

    def per_batch(fb, eib, sb):
        h0 = jnp.zeros(fb.shape[1:], jnp.float32)
        _, yb = lax.scan(step, h0, (fb, eib, sb))
        return yb

    y = jax.vmap(per_batch)(f, ei, s)
    mu = y.mean(-1, keepdims=True)
    var = jnp.square(y - mu).mean(-1, keepdims=True)
    yn = (y - mu) / jnp.sqrt(var + 1e-5)
    yn = yn * p["ln_w"][0] + p["ln_b"][0]
    return mm(yn, p["wo_t"])


if __name__ == "__main__":
    # batch, seq, embed_dim, expand_dim, ssm_dim; chunk=8 exercises the
    # cross-chunk state carry (grid = (2, 2)) while keeping shapes small.
    B, N, D, K, S = 2, 16, 32, 8, 16
    key = jax.random.PRNGKey(0)
    kx, kp = jax.random.split(key)
    x = jax.random.normal(kx, (B, N, D), dtype=jnp.float32)
    params = init_params(kp, D, K, S)

    out = eos_layer_forward(x, params, chunk=8)
    out = jax.block_until_ready(out)

    ref = eos_layer_reference(x, params, mxu_dtype=jnp.bfloat16)
    assert out.shape == (B, N, D)
    max_err = float(jnp.max(jnp.abs(out - ref)))
    if not max_err < 5e-3:
        raise AssertionError(f"kernel/reference mismatch, max abs err = {max_err}")
    print("KERNEL_OK")
</pallas_src>

<mosaic_0001>
module attributes {stable_mosaic.version = 11 : i64} {
  func.func @_eos_kernel(%arg0: i32, %arg1: i32, %arg2: memref<1x8x32xf32, #tpu.memory_space<vmem>>, %arg3: memref<32x512xbf16, #tpu.memory_space<vmem>>, %arg4: memref<16x32xbf16, #tpu.memory_space<vmem>>, %arg5: memref<8x32xf32, #tpu.memory_space<vmem>>, %arg6: memref<1x32xf32, #tpu.memory_space<vmem>>, %arg7: memref<1x32xf32, #tpu.memory_space<vmem>>, %arg8: memref<32x32xbf16, #tpu.memory_space<vmem>>, %arg9: memref<1x8x32xf32, #tpu.memory_space<vmem>>, %arg10: memref<8x32xf32, #tpu.memory_space<vmem>>, %arg11: memref<8x32xf32, #tpu.memory_space<vmem>>, %arg12: memref<8x32xf32, #tpu.memory_space<vmem>>, %arg13: memref<8x16xf32, #tpu.memory_space<vmem>>, %arg14: memref<8x32xf32, #tpu.memory_space<vmem>>) attributes {dimension_semantics = [#tpu.dimension_semantics<parallel>, #tpu.dimension_semantics<arbitrary>], iteration_bounds = array<i64: 2, 2>, scalar_prefetch = 0 : i64, scratch_operands = 5 : i64, tpu.core_type = #tpu.core_type<tc>, window_params = [{transform_indices = @transform_0, window_bounds = array<i64: 1, 8, 32>}, {pipeline_mode = #tpu.pipeline_mode<synchronous>, transform_indices = @transform_1, window_bounds = array<i64: 32, 512>}, {pipeline_mode = #tpu.pipeline_mode<synchronous>, transform_indices = @transform_2, window_bounds = array<i64: 16, 32>}, {pipeline_mode = #tpu.pipeline_mode<synchronous>, transform_indices = @transform_3, window_bounds = array<i64: 8, 32>}, {pipeline_mode = #tpu.pipeline_mode<synchronous>, transform_indices = @transform_4, window_bounds = array<i64: 1, 32>}, {pipeline_mode = #tpu.pipeline_mode<synchronous>, transform_indices = @transform_5, window_bounds = array<i64: 1, 32>}, {pipeline_mode = #tpu.pipeline_mode<synchronous>, transform_indices = @transform_6, window_bounds = array<i64: 32, 32>}, {transform_indices = @transform_7, window_bounds = array<i64: 1, 8, 32>}]} {
    %c0_i32 = arith.constant 0 : i32
    %0 = arith.cmpi eq, %arg1, %c0_i32 : i32
    %1 = arith.extui %0 : i1 to i32
    %c0_i32_0 = arith.constant 0 : i32
    %2 = arith.cmpi ne, %1, %c0_i32_0 : i32
    scf.if %2 {
      %cst_52 = arith.constant 0.000000e+00 : f32
      %208 = vector.broadcast %cst_52 : f32 to vector<8x32xf32>
      %c0_53 = arith.constant 0 : index
      %c0_54 = arith.constant 0 : index
      %209 = vector.load %arg10[%c0_53, %c0_54] : memref<8x32xf32, #tpu.memory_space<vmem>>, vector<8x32xf32>
      tpu.vector_store %arg10[%c0_53, %c0_54], %208 {strides = array<i32>} : memref<8x32xf32, #tpu.memory_space<vmem>>, vector<8x32xf32>,
    } else {
    }
    %c0 = arith.constant 0 : index
    %c0_1 = arith.constant 0 : index
    %c0_2 = arith.constant 0 : index
    %3 = vector.load %arg2[%c0, %c0_1, %c0_2] : memref<1x8x32xf32, #tpu.memory_space<vmem>>, vector<1x8x32xf32>
    %4 = vector.shape_cast %3 : vector<1x8x32xf32> to vector<8x32xf32>
    %5 = arith.truncf %4 : vector<8x32xf32> to vector<8x32xbf16>
    %c0_3 = arith.constant 0 : index
    %c0_4 = arith.constant 0 : index
    %6 = vector.load %arg3[%c0_3, %c0_4] : memref<32x512xbf16, #tpu.memory_space<vmem>>, vector<32x512xbf16>
    %cst = arith.constant dense<0.000000e+00> : vector<8x512xf32>
    %7 = tpu.matmul %5, %6, %cst {dimension_numbers = #tpu.dot_dimension_numbers<[1], [0], [0], [1], [0, 0, 1, 1], [], []>} : vector<8x32xbf16>, vector<32x512xbf16>, vector<8x512xf32> -> vector<8x512xf32>
    %8 = vector.extract_strided_slice %7 {offsets = [0, 0], sizes = [8, 32], strides = [1, 1]} : vector<8x512xf32> to vector<8x32xf32>
    %9 = vector.extract_strided_slice %7 {offsets = [0, 128], sizes = [8, 16], strides = [1, 1]} : vector<8x512xf32> to vector<8x16xf32>
    %10 = vector.extract_strided_slice %7 {offsets = [0, 256], sizes = [8, 8], strides = [1, 1]} : vector<8x512xf32> to vector<8x8xf32>
    %11 = vector.extract_strided_slice %7 {offsets = [0, 384], sizes = [8, 8], strides = [1, 1]} : vector<8x512xf32> to vector<8x8xf32>
    %12 = arith.truncf %9 : vector<8x16xf32> to vector<8x16xbf16>
    %c0_5 = arith.constant 0 : index
    %c0_6 = arith.constant 0 : index
    %13 = vector.load %arg4[%c0_5, %c0_6] : memref<16x32xbf16, #tpu.memory_space<vmem>>, vector<16x32xbf16>
    %cst_7 = arith.constant dense<0.000000e+00> : vector<8x32xf32>
    %14 = tpu.matmul %12, %13, %cst_7 {dimension_numbers = #tpu.dot_dimension_numbers<[1], [0], [0], [1], [0, 0, 1, 1], [], []>} : vector<8x16xbf16>, vector<16x32xbf16>, vector<8x32xf32> -> vector<8x32xf32>
    %cst_8 = arith.constant 0.000000e+00 : f32
    %15 = vector.broadcast %cst_8 : f32 to vector<8x32xf32>
    %16 = arith.maximumf %14, %15 : vector<8x32xf32>
    %17 = vector.broadcast %cst_8 : f32 to vector<8x32xf32>
    %18 = arith.subf %14, %17 : vector<8x32xf32>
    %19 = arith.cmpf one, %18, %18 : vector<8x32xf32>
    %20 = vector.broadcast %cst_8 : f32 to vector<8x32xf32>
    %21 = arith.addf %14, %20 : vector<8x32xf32>
    %22 = math.absf %18 : vector<8x32xf32>
    %cst_9 = arith.constant 0.000000e+00 : f32
    %23 = vector.broadcast %cst_9 : f32 to vector<8x32xf32>
    %24 = arith.subf %23, %22 : vector<8x32xf32>
    %25 = math.exp %24 : vector<8x32xf32>
    %26 = math.log1p %25 : vector<8x32xf32>
    %27 = arith.addf %16, %26 : vector<8x32xf32>
    %28 = arith.select %19, %21, %27 : vector<8x32xi1>, vector<8x32xf32>
    %c0_10 = arith.constant 0 : index
    %c0_11 = arith.constant 0 : index
    %29 = vector.load %arg11[%c0_10, %c0_11] : memref<8x32xf32, #tpu.memory_space<vmem>>, vector<8x32xf32>
    tpu.vector_store %arg11[%c0_10, %c0_11], %28 {strides = array<i32>} : memref<8x32xf32, #tpu.memory_space<vmem>>, vector<8x32xf32>,
    %30 = arith.mulf %28, %8 : vector<8x32xf32>
    %c0_12 = arith.constant 0 : index
    %c0_13 = arith.constant 0 : index
    %31 = vector.load %arg12[%c0_12, %c0_13] : memref<8x32xf32, #tpu.memory_space<vmem>>, vector<8x32xf32>
    tpu.vector_store %arg12[%c0_12, %c0_13], %30 {strides = array<i32>} : memref<8x32xf32, #tpu.memory_space<vmem>>, vector<8x32xf32>,
    %32 = tpu.concatenate %10, %11 in 1 : vector<8x8xf32>, vector<8x8xf32> -> vector<8x16xf32>
    %c0_14 = arith.constant 0 : index
    %c0_15 = arith.constant 0 : index
    %33 = vector.load %arg13[%c0_14, %c0_15] : memref<8x16xf32, #tpu.memory_space<vmem>>, vector<8x16xf32>
    tpu.vector_store %arg13[%c0_14, %c0_15], %32 {strides = array<i32>} : memref<8x16xf32, #tpu.memory_space<vmem>>, vector<8x16xf32>,
    %c0_16 = arith.constant 0 : index
    %c0_17 = arith.constant 0 : index
    %34 = vector.load %arg5[%c0_16, %c0_17] : memref<8x32xf32, #tpu.memory_space<vmem>>, vector<8x32xf32>
    %c0_18 = arith.constant 0 : index
    %c0_19 = arith.constant 0 : index
    %35 = vector.load %arg10[%c0_18, %c0_19] : memref<8x32xf32, #tpu.memory_space<vmem>>, vector<8x32xf32>
    %c0_i32_20 = arith.constant 0 : i32
    %c8_i32 = arith.constant 8 : i32
    %36 = arith.muli %c0_i32_20, %c8_i32 : i32
    %37 = tpu.assume_multiple %36, 8 : i32
    %38 = arith.index_cast %37 : i32 to index
    %c0_21 = arith.constant 0 : index
    %39 = vector.load %arg11[%38, %c0_21] : memref<8x32xf32, #tpu.memory_space<vmem>>, vector<8x32xf32>
    %40 = arith.index_cast %37 : i32 to index
    %c0_22 = arith.constant 0 : index
    %41 = vector.load %arg12[%40, %c0_22] : memref<8x32xf32, #tpu.memory_space<vmem>>, vector<8x32xf32>
    %42 = arith.index_cast %37 : i32 to index
    %c0_23 = arith.constant 0 : index
    %43 = vector.load %arg13[%42, %c0_23] : memref<8x16xf32, #tpu.memory_space<vmem>>, vector<8x16xf32>
    %44 = tpu.transpose %43, [1, 0] : vector<8x16xf32> -> vector<16x8xf32>
    %45 = vector.extract_strided_slice %39 {offsets = [0, 0], sizes = [1, 32], strides = [1, 1]} : vector<8x32xf32> to vector<1x32xf32>
    %46 = vector.broadcast %45 : vector<1x32xf32> to vector<8x32xf32>
    %47 = arith.mulf %46, %34 : vector<8x32xf32>
    %48 = math.exp %47 : vector<8x32xf32>
    %49 = vector.extract_strided_slice %44 {offsets = [0, 0], sizes = [8, 1], strides = [1, 1]} : vector<16x8xf32> to vector<8x1xf32>
    %50 = vector.extract_strided_slice %44 {offsets = [8, 0], sizes = [8, 1], strides = [1, 1]} : vector<16x8xf32> to vector<8x1xf32>
    %51 = arith.mulf %48, %35 : vector<8x32xf32>
    %52 = vector.extract_strided_slice %41 {offsets = [0, 0], sizes = [1, 32], strides = [1, 1]} : vector<8x32xf32> to vector<1x32xf32>
    %53 = vector.broadcast %49 : vector<8x1xf32> to vector<8x32xf32>
    %54 = vector.broadcast %52 : vector<1x32xf32> to vector<8x32xf32>
    %55 = arith.mulf %53, %54 : vector<8x32xf32>
    %56 = arith.addf %51, %55 : vector<8x32xf32>
    %57 = vector.broadcast %50 : vector<8x1xf32> to vector<8x32xf32>
    %58 = arith.mulf %57, %56 : vector<8x32xf32>
    %cst_24 = arith.constant dense<0.000000e+00> : vector<32xf32>
    %59 = vector.multi_reduction <add>, %58, %cst_24 [0] : vector<8x32xf32> to vector<32xf32>
    %60 = vector.shape_cast %59 : vector<32xf32> to vector<1x32xf32>
    %61 = vector.extract_strided_slice %39 {offsets = [1, 0], sizes = [1, 32], strides = [1, 1]} : vector<8x32xf32> to vector<1x32xf32>
    %62 = vector.broadcast %61 : vector<1x32xf32> to vector<8x32xf32>
    %63 = arith.mulf %62, %34 : vector<8x32xf32>
    %64 = math.exp %63 : vector<8x32xf32>
    %65 = vector.extract_strided_slice %44 {offsets = [0, 1], sizes = [8, 1], strides = [1, 1]} : vector<16x8xf32> to vector<8x1xf32>
    %66 = vector.extract_strided_slice %44 {offsets = [8, 1], sizes = [8, 1], strides = [1, 1]} : vector<16x8xf32> to vector<8x1xf32>
    %67 = arith.mulf %64, %56 : vector<8x32xf32>
    %68 = vector.extract_strided_slice %41 {offsets = [1, 0], sizes = [1, 32], strides = [1, 1]} : vector<8x32xf32> to vector<1x32xf32>
    %69 = vector.broadcast %65 : vector<8x1xf32> to vector<8x32xf32>
    %70 = vector.broadcast %68 : vector<1x32xf32> to vector<8x32xf32>
    %71 = arith.mulf %69, %70 : vector<8x32xf32>
    %72 = arith.addf %67, %71 : vector<8x32xf32>
    %73 = vector.broadcast %66 : vector<8x1xf32> to vector<8x32xf32>
    %74 = arith.mulf %73, %72 : vector<8x32xf32>
    %cst_25 = arith.constant dense<0.000000e+00> : vector<32xf32>
    %75 = vector.multi_reduction <add>, %74, %cst_25 [0] : vector<8x32xf32> to vector<32xf32>
    %76 = vector.shape_cast %75 : vector<32xf32> to vector<1x32xf32>
    %77 = vector.extract_strided_slice %39 {offsets = [2, 0], sizes = [1, 32], strides = [1, 1]} : vector<8x32xf32> to vector<1x32xf32>
    %78 = vector.broadcast %77 : vector<1x32xf32> to vector<8x32xf32>
    %79 = arith.mulf %78, %34 : vector<8x32xf32>
    %80 = math.exp %79 : vector<8x32xf32>
    %81 = vector.extract_strided_slice %44 {offsets = [0, 2], sizes = [8, 1], strides = [1, 1]} : vector<16x8xf32> to vector<8x1xf32>
    %82 = vector.extract_strided_slice %44 {offsets = [8, 2], sizes = [8, 1], strides = [1, 1]} : vector<16x8xf32> to vector<8x1xf32>
    %83 = arith.mulf %80, %72 : vector<8x32xf32>
    %84 = vector.extract_strided_slice %41 {offsets = [2, 0], sizes = [1, 32], strides = [1, 1]} : vector<8x32xf32> to vector<1x32xf32>
    %85 = vector.broadcast %81 : vector<8x1xf32> to vector<8x32xf32>
    %86 = vector.broadcast %84 : vector<1x32xf32> to vector<8x32xf32>
    %87 = arith.mulf %85, %86 : vector<8x32xf32>
    %88 = arith.addf %83, %87 : vector<8x32xf32>
    %89 = vector.broadcast %82 : vector<8x1xf32> to vector<8x32xf32>
    %90 = arith.mulf %89, %88 : vector<8x32xf32>
    %cst_26 = arith.constant dense<0.000000e+00> : vector<32xf32>
    %91 = vector.multi_reduction <add>, %90, %cst_26 [0] : vector<8x32xf32> to vector<32xf32>
    %92 = vector.shape_cast %91 : vector<32xf32> to vector<1x32xf32>
    %93 = vector.extract_strided_slice %39 {offsets = [3, 0], sizes = [1, 32], strides = [1, 1]} : vector<8x32xf32> to vector<1x32xf32>
    %94 = vector.broadcast %93 : vector<1x32xf32> to vector<8x32xf32>
    %95 = arith.mulf %94, %34 : vector<8x32xf32>
    %96 = math.exp %95 : vector<8x32xf32>
    %97 = vector.extract_strided_slice %44 {offsets = [0, 3], sizes = [8, 1], strides = [1, 1]} : vector<16x8xf32> to vector<8x1xf32>
    %98 = vector.extract_strided_slice %44 {offsets = [8, 3], sizes = [8, 1], strides = [1, 1]} : vector<16x8xf32> to vector<8x1xf32>
    %99 = arith.mulf %96, %88 : vector<8x32xf32>
    %100 = vector.extract_strided_slice %41 {offsets = [3, 0], sizes = [1, 32], strides = [1, 1]} : vector<8x32xf32> to vector<1x32xf32>
    %101 = vector.broadcast %97 : vector<8x1xf32> to vector<8x32xf32>
    %102 = vector.broadcast %100 : vector<1x32xf32> to vector<8x32xf32>
    %103 = arith.mulf %101, %102 : vector<8x32xf32>
    %104 = arith.addf %99, %103 : vector<8x32xf32>
    %105 = vector.broadcast %98 : vector<8x1xf32> to vector<8x32xf32>
    %106 = arith.mulf %105, %104 : vector<8x32xf32>
    %cst_27 = arith.constant dense<0.000000e+00> : vector<32xf32>
    %107 = vector.multi_reduction <add>, %106, %cst_27 [0] : vector<8x32xf32> to vector<32xf32>
    %108 = vector.shape_cast %107 : vector<32xf32> to vector<1x32xf32>
    %109 = vector.extract_strided_slice %39 {offsets = [4, 0], sizes = [1, 32], strides = [1, 1]} : vector<8x32xf32> to vector<1x32xf32>
    %110 = vector.broadcast %109 : vector<1x32xf32> to vector<8x32xf32>
    %111 = arith.mulf %110, %34 : vector<8x32xf32>
    %112 = math.exp %111 : vector<8x32xf32>
    %113 = vector.extract_strided_slice %44 {offsets = [0, 4], sizes = [8, 1], strides = [1, 1]} : vector<16x8xf32> to vector<8x1xf32>
    %114 = vector.extract_strided_slice %44 {offsets = [8, 4], sizes = [8, 1], strides = [1, 1]} : vector<16x8xf32> to vector<8x1xf32>
    %115 = arith.mulf %112, %104 : vector<8x32xf32>
    %116 = vector.extract_strided_slice %41 {offsets = [4, 0], sizes = [1, 32], strides = [1, 1]} : vector<8x32xf32> to vector<1x32xf32>
    %117 = vector.broadcast %113 : vector<8x1xf32> to vector<8x32xf32>
    %118 = vector.broadcast %116 : vector<1x32xf32> to vector<8x32xf32>
    %119 = arith.mulf %117, %118 : vector<8x32xf32>
    %120 = arith.addf %115, %119 : vector<8x32xf32>
    %121 = vector.broadcast %114 : vector<8x1xf32> to vector<8x32xf32>
    %122 = arith.mulf %121, %120 : vector<8x32xf32>
    %cst_28 = arith.constant dense<0.000000e+00> : vector<32xf32>
    %123 = vector.multi_reduction <add>, %122, %cst_28 [0] : vector<8x32xf32> to vector<32xf32>
    %124 = vector.shape_cast %123 : vector<32xf32> to vector<1x32xf32>
    %125 = vector.extract_strided_slice %39 {offsets = [5, 0], sizes = [1, 32], strides = [1, 1]} : vector<8x32xf32> to vector<1x32xf32>
    %126 = vector.broadcast %125 : vector<1x32xf32> to vector<8x32xf32>
    %127 = arith.mulf %126, %34 : vector<8x32xf32>
    %128 = math.exp %127 : vector<8x32xf32>
    %129 = vector.extract_strided_slice %44 {offsets = [0, 5], sizes = [8, 1], strides = [1, 1]} : vector<16x8xf32> to vector<8x1xf32>
    %130 = vector.extract_strided_slice %44 {offsets = [8, 5], sizes = [8, 1], strides = [1, 1]} : vector<16x8xf32> to vector<8x1xf32>
    %131 = arith.mulf %128, %120 : vector<8x32xf32>
    %132 = vector.extract_strided_slice %41 {offsets = [5, 0], sizes = [1, 32], strides = [1, 1]} : vector<8x32xf32> to vector<1x32xf32>
    %133 = vector.broadcast %129 : vector<8x1xf32> to vector<8x32xf32>
    %134 = vector.broadcast %132 : vector<1x32xf32> to vector<8x32xf32>
    %135 = arith.mulf %133, %134 : vector<8x32xf32>
    %136 = arith.addf %131, %135 : vector<8x32xf32>
    %137 = vector.broadcast %130 : vector<8x1xf32> to vector<8x32xf32>
    %138 = arith.mulf %137, %136 : vector<8x32xf32>
    %cst_29 = arith.constant dense<0.000000e+00> : vector<32xf32>
    %139 = vector.multi_reduction <add>, %138, %cst_29 [0] : vector<8x32xf32> to vector<32xf32>
    %140 = vector.shape_cast %139 : vector<32xf32> to vector<1x32xf32>
    %141 = vector.extract_strided_slice %39 {offsets = [6, 0], sizes = [1, 32], strides = [1, 1]} : vector<8x32xf32> to vector<1x32xf32>
    %142 = vector.broadcast %141 : vector<1x32xf32> to vector<8x32xf32>
    %143 = arith.mulf %142, %34 : vector<8x32xf32>
    %144 = math.exp %143 : vector<8x32xf32>
    %145 = vector.extract_strided_slice %44 {offsets = [0, 6], sizes = [8, 1], strides = [1, 1]} : vector<16x8xf32> to vector<8x1xf32>
    %146 = vector.extract_strided_slice %44 {offsets = [8, 6], sizes = [8, 1], strides = [1, 1]} : vector<16x8xf32> to vector<8x1xf32>
    %147 = arith.mulf %144, %136 : vector<8x32xf32>
    %148 = vector.extract_strided_slice %41 {offsets = [6, 0], sizes = [1, 32], strides = [1, 1]} : vector<8x32xf32> to vector<1x32xf32>
    %149 = vector.broadcast %145 : vector<8x1xf32> to vector<8x32xf32>
    %150 = vector.broadcast %148 : vector<1x32xf32> to vector<8x32xf32>
    %151 = arith.mulf %149, %150 : vector<8x32xf32>
    %152 = arith.addf %147, %151 : vector<8x32xf32>
    %153 = vector.broadcast %146 : vector<8x1xf32> to vector<8x32xf32>
    %154 = arith.mulf %153, %152 : vector<8x32xf32>
    %cst_30 = arith.constant dense<0.000000e+00> : vector<32xf32>
    %155 = vector.multi_reduction <add>, %154, %cst_30 [0] : vector<8x32xf32> to vector<32xf32>
    %156 = vector.shape_cast %155 : vector<32xf32> to vector<1x32xf32>
    %157 = vector.extract_strided_slice %39 {offsets = [7, 0], sizes = [1, 32], strides = [1, 1]} : vector<8x32xf32> to vector<1x32xf32>
    %158 = vector.broadcast %157 : vector<1x32xf32> to vector<8x32xf32>
    %159 = arith.mulf %158, %34 : vector<8x32xf32>
    %160 = math.exp %159 : vector<8x32xf32>
    %161 = vector.extract_strided_slice %44 {offsets = [0, 7], sizes = [8, 1], strides = [1, 1]} : vector<16x8xf32> to vector<8x1xf32>
    %162 = vector.extract_strided_slice %44 {offsets = [8, 7], sizes = [8, 1], strides = [1, 1]} : vector<16x8xf32> to vector<8x1xf32>
    %163 = arith.mulf %160, %152 : vector<8x32xf32>
    %164 = vector.extract_strided_slice %41 {offsets = [7, 0], sizes = [1, 32], strides = [1, 1]} : vector<8x32xf32> to vector<1x32xf32>
    %165 = vector.broadcast %161 : vector<8x1xf32> to vector<8x32xf32>
    %166 = vector.broadcast %164 : vector<1x32xf32> to vector<8x32xf32>
    %167 = arith.mulf %165, %166 : vector<8x32xf32>
    %168 = arith.addf %163, %167 : vector<8x32xf32>
    %169 = vector.broadcast %162 : vector<8x1xf32> to vector<8x32xf32>
    %170 = arith.mulf %169, %168 : vector<8x32xf32>
    %cst_31 = arith.constant dense<0.000000e+00> : vector<32xf32>
    %171 = vector.multi_reduction <add>, %170, %cst_31 [0] : vector<8x32xf32> to vector<32xf32>
    %172 = vector.shape_cast %171 : vector<32xf32> to vector<1x32xf32>
    %173 = tpu.concatenate %60, %76, %92, %108, %124, %140, %156, %172 in 0 : vector<1x32xf32>, vector<1x32xf32>, vector<1x32xf32>, vector<1x32xf32>, vector<1x32xf32>, vector<1x32xf32>, vector<1x32xf32>, vector<1x32xf32> -> vector<8x32xf32>
    %174 = arith.index_cast %37 : i32 to index
    %c0_32 = arith.constant 0 : index
    %175 = vector.load %arg14[%174, %c0_32] : memref<8x32xf32, #tpu.memory_space<vmem>>, vector<8x32xf32>
    tpu.vector_store %arg14[%174, %c0_32], %173 {strides = array<i32>} : memref<8x32xf32, #tpu.memory_space<vmem>>, vector<8x32xf32>,
    %c1_i32 = arith.constant 1 : i32
    %c0_33 = arith.constant 0 : index
    %c0_34 = arith.constant 0 : index
    %176 = vector.load %arg10[%c0_33, %c0_34] : memref<8x32xf32, #tpu.memory_space<vmem>>, vector<8x32xf32>
    tpu.vector_store %arg10[%c0_33, %c0_34], %168 {strides = array<i32>} : memref<8x32xf32, #tpu.memory_space<vmem>>, vector<8x32xf32>,
    %c0_35 = arith.constant 0 : index
    %c0_36 = arith.constant 0 : index
    %177 = vector.load %arg14[%c0_35, %c0_36] : memref<8x32xf32, #tpu.memory_space<vmem>>, vector<8x32xf32>
    %cst_37 = arith.constant dense<0.000000e+00> : vector<8xf32>
    %178 = vector.multi_reduction <add>, %177, %cst_37 [1] : vector<8x32xf32> to vector<8xf32>
    %179 = vector.shape_cast %178 : vector<8xf32> to vector<8x1xf32>
    %cst_38 = arith.constant 3.200000e+01 : f32
    %180 = vector.broadcast %cst_38 : f32 to vector<8x1xf32>
    %181 = arith.divf %179, %180 : vector<8x1xf32>
    %182 = vector.broadcast %181 : vector<8x1xf32> to vector<8x32xf32>
    %183 = arith.subf %177, %182 : vector<8x32xf32>
    %184 = arith.mulf %183, %183 : vector<8x32xf32>
    %cst_39 = arith.constant dense<0.000000e+00> : vector<8xf32>
    %185 = vector.multi_reduction <add>, %184, %cst_39 [1] : vector<8x32xf32> to vector<8xf32>
    %186 = vector.shape_cast %185 : vector<8xf32> to vector<8x1xf32>
    %cst_40 = arith.constant 3.200000e+01 : f32
    %187 = vector.broadcast %cst_40 : f32 to vector<8x1xf32>
    %188 = arith.divf %186, %187 : vector<8x1xf32>
    %189 = vector.broadcast %181 : vector<8x1xf32> to vector<8x32xf32>
    %190 = arith.subf %177, %189 : vector<8x32xf32>
    %cst_41 = arith.constant 9.99999974E-6 : f32
    %191 = vector.broadcast %cst_41 : f32 to vector<8x1xf32>
    %192 = arith.addf %188, %191 : vector<8x1xf32>
    %193 = math.rsqrt %192 : vector<8x1xf32>
    %194 = vector.broadcast %193 : vector<8x1xf32> to vector<8x32xf32>
    %195 = arith.mulf %190, %194 : vector<8x32xf32>
    %c0_42 = arith.constant 0 : index
    %c0_43 = arith.constant 0 : index
    %196 = vector.load %arg6[%c0_42, %c0_43] : memref<1x32xf32, #tpu.memory_space<vmem>>, vector<1x32xf32>
    %197 = vector.broadcast %196 : vector<1x32xf32> to vector<8x32xf32>
    %198 = arith.mulf %195, %197 : vector<8x32xf32>
    %c0_44 = arith.constant 0 : index
    %c0_45 = arith.constant 0 : index
    %199 = vector.load %arg7[%c0_44, %c0_45] : memref<1x32xf32, #tpu.memory_space<vmem>>, vector<1x32xf32>
    %200 = vector.broadcast %199 : vector<1x32xf32> to vector<8x32xf32>
    %201 = arith.addf %198, %200 : vector<8x32xf32>
    %202 = arith.truncf %201 : vector<8x32xf32> to vector<8x32xbf16>
    %c0_46 = arith.constant 0 : index
    %c0_47 = arith.constant 0 : index
    %203 = vector.load %arg8[%c0_46, %c0_47] : memref<32x32xbf16, #tpu.memory_space<vmem>>, vector<32x32xbf16>
    %cst_48 = arith.constant dense<0.000000e+00> : vector<8x32xf32>
    %204 = tpu.matmul %202, %203, %cst_48 {dimension_numbers = #tpu.dot_dimension_numbers<[1], [0], [0], [1], [0, 0, 1, 1], [], []>} : vector<8x32xbf16>, vector<32x32xbf16>, vector<8x32xf32> -> vector<8x32xf32>
    %c0_49 = arith.constant 0 : index
    %c0_50 = arith.constant 0 : index
    %c0_51 = arith.constant 0 : index
    %205 = vector.load %arg9[%c0_49, %c0_50, %c0_51] : memref<1x8x32xf32, #tpu.memory_space<vmem>>, vector<1x8x32xf32>
    %206 = vector.shape_cast %205 : vector<1x8x32xf32> to vector<8x32xf32>
    %207 = vector.shape_cast %204 : vector<8x32xf32> to vector<1x8x32xf32>
    tpu.vector_store %arg9[%c0_49, %c0_50, %c0_51], %207 {strides = array<i32>} : memref<1x8x32xf32, #tpu.memory_space<vmem>>, vector<1x8x32xf32>,
    return
  }
  func.func @transform_0(%arg0: i32, %arg1: i32) -> (i32, i32, i32) {
    %c0_i32 = arith.constant 0 : i32
    %c0_i32_0 = arith.constant 0 : i32
    return %arg0, %arg1, %c0_i32 : i32, i32, i32
  }
  func.func @transform_1(%arg0: i32, %arg1: i32) -> (i32, i32) {
    %c0_i32 = arith.constant 0 : i32
    %c0_i32_0 = arith.constant 0 : i32
    %c0_i32_1 = arith.constant 0 : i32
    return %c0_i32, %c0_i32_0 : i32, i32
  }
  func.func @transform_2(%arg0: i32, %arg1: i32) -> (i32, i32) {
    %c0_i32 = arith.constant 0 : i32
    %c0_i32_0 = arith.constant 0 : i32
    %c0_i32_1 = arith.constant 0 : i32
    return %c0_i32, %c0_i32_0 : i32, i32
  }
  func.func @transform_3(%arg0: i32, %arg1: i32) -> (i32, i32) {
    %c0_i32 = arith.constant 0 : i32
    %c0_i32_0 = arith.constant 0 : i32
    %c0_i32_1 = arith.constant 0 : i32
    return %c0_i32, %c0_i32_0 : i32, i32
  }
  func.func @transform_4(%arg0: i32, %arg1: i32) -> (i32, i32) {
    %c0_i32 = arith.constant 0 : i32
    %c0_i32_0 = arith.constant 0 : i32
    %c0_i32_1 = arith.constant 0 : i32
    return %c0_i32, %c0_i32_0 : i32, i32
  }
  func.func @transform_5(%arg0: i32, %arg1: i32) -> (i32, i32) {
    %c0_i32 = arith.constant 0 : i32
    %c0_i32_0 = arith.constant 0 : i32
    %c0_i32_1 = arith.constant 0 : i32
    return %c0_i32, %c0_i32_0 : i32, i32
  }
  func.func @transform_6(%arg0: i32, %arg1: i32) -> (i32, i32) {
    %c0_i32 = arith.constant 0 : i32
    %c0_i32_0 = arith.constant 0 : i32
    %c0_i32_1 = arith.constant 0 : i32
    return %c0_i32, %c0_i32_0 : i32, i32
  }
  func.func @transform_7(%arg0: i32, %arg1: i32) -> (i32, i32, i32) {
    %c0_i32 = arith.constant 0 : i32
    %c0_i32_0 = arith.constant 0 : i32
    return %arg0, %arg1, %c0_i32 : i32, i32, i32
  }
}

</mosaic_0001>

<llo_original>
// kernel: tpu_custom_call.1
$region0: #{tpu_custom_call.1}
  #allocation0 [shape = 'u32[]', space=smem, size = 0x4, offset = 0x4, fixed_abs, tag = 'smem constant byte address 0x4 - core index']
  #allocation1 [shape = 'u32[72,128]{1,0:T(1,128)}', space=vmem, size = 0x9000, scoped, tag = 'internal scratch']
  #allocation2 [shape = 'f32[8,32]{1,0:T(8,128)}', space=vmem, size = 0x1000, scoped, tag = 'scratch operand']
  #allocation3 [shape = 'f32[8,32]{1,0:T(8,128)}', space=vmem, size = 0x1000, scoped, tag = 'scratch operand']
  #allocation4 [shape = 'f32[8,32]{1,0:T(8,128)}', space=vmem, size = 0x1000, scoped, tag = 'scratch operand']
  #allocation5 [shape = 'f32[8,16]{1,0:T(8,128)}', space=vmem, size = 0x1000, scoped, tag = 'scratch operand']
  #allocation6 [shape = 'f32[8,32]{1,0:T(8,128)}', space=vmem, size = 0x1000, scoped, tag = 'scratch operand']
  %s0 = inlined_call_operand.hbm [shape: f32[2,16,32], index: 0, kind: input, shape index: {}]
  %s1 = inlined_call_operand.hbm [shape: bf16[32,512], index: 1, kind: input, shape index: {}]
  %s2 = inlined_call_operand.hbm [shape: bf16[16,32], index: 2, kind: input, shape index: {}]
  %s3 = inlined_call_operand.hbm [shape: f32[8,32], index: 3, kind: input, shape index: {}]
  %s4 = inlined_call_operand.vmem [shape: f32[1,32], index: 4, kind: input, shape index: {}]
  %s5 = inlined_call_operand.vmem [shape: f32[1,32], index: 5, kind: input, shape index: {}]
  %s6 = inlined_call_operand.hbm [shape: bf16[32,32], index: 6, kind: input, shape index: {}]
  %s7 = inlined_call_operand.hbm [shape: f32[2,16,32], index: 7, kind: output, shape index: {}]
  %s8 = sld [smem:[#allocation0]]
  $region85: #{tpu_custom_call.1} parent=0
    _
  %s10 = ssub.s32 1, %s8
  %s11 = scalar_select 0, %s10, %s8
  $region1: #{tpu_custom_call.1} parent=0
    #allocation7 [shape = 'u8[8192]{0}', space=vmem, size = 0x2000, scoped, tag = 'input window, operand 0']
    #allocation8 [shape = 's32[2]{0}', space=sflag, size = 0x8, scoped, tag = 'scoped memory for tpu_custom_call.1']
    #allocation9 [shape = 's32[2]{0}', space=sflag, size = 0x8, scoped, tag = 'scoped memory for tpu_custom_call.1']
    #allocation10 [shape = 'u8[32768]{0}', space=vmem, size = 0x8000, scoped, tag = 'input window, operand 1, single buffered']
    #allocation11 [shape = 's32[1]{0}', space=sflag, size = 0x4, scoped, tag = 'scoped memory for tpu_custom_call.1']
    #allocation12 [shape = 'u8[4096]{0}', space=vmem, size = 0x1000, scoped, tag = 'input window, operand 2, single buffered']
    #allocation13 [shape = 'u8[4096]{0}', space=vmem, size = 0x1000, scoped, tag = 'input window, operand 3, single buffered']
    #allocation14 [shape = 's32[1]{0}', space=sflag, size = 0x4, scoped, tag = 'scoped memory for tpu_custom_call.1']
    #allocation15 [shape = 'u8[8192]{0}', space=vmem, size = 0x2000, scoped, tag = 'input window, operand 6, single buffered']
    #allocation16 [shape = 'u8[8192]{0}', space=vmem, size = 0x2000, scoped, tag = 'output window, operand 0']
    %12 = vsyncpa [#allocation8], 0
    %s13 = scalar_lea.sflag [#allocation8], 1
    %14 = vsyncpa %s13, 0
    %15 = vsyncpa [#allocation11], 0
    %16 = vsyncpa [#allocation14], 0
    %17 = vsyncpa [#allocation9], 0
    %s18 = scalar_lea.sflag [#allocation9], 1
    %19 = vsyncpa %s18, 0
    loop: start=0, step=1, limit=6
    $region2: #{tpu_custom_call.1} parent=1 // loop_pre_header
      _
    $region3: #{tpu_custom_call.1} parent=1 // loop_header
      %s21 = sphi 0, %s25
      %p22 = scmp.ge.s32.totalorder %s21, 6
      %s28 = sphi 0, %s40
      %s29 = sphi 0, %s36
      %s30 = sphi 0, %s28
      %s31 = sphi 0, %s29
      %s32 = sphi 0, %s30
      %s33 = sphi 0, %s31
      %s45 = sphi 0, %s47
      %s48 = sphi 0, %s45
      %s49 = sphi 0, %s48
      %s65 = sphi 0, %s49
      %s69 = sphi 0, %s69
      %s71 = sphi 0, %s69
      %s72 = sphi 0, %s71
      %s86 = sphi 0, %s72
      %s90 = sphi 0, %s90
      %s92 = sphi 0, %s90
      %s93 = sphi 0, %s92
      %s107 = sphi 0, %s93
      %s111 = sphi 0, %s111
      %s113 = sphi 0, %s111
      %s114 = sphi 0, %s113
      %s128 = sphi 0, %s114
      %s132 = sphi 0, %s132
      %s134 = sphi 0, %s132
      %s135 = sphi 0, %s134
      %s149 = sphi 0, %s135
      %s153 = sphi 0, %s153
      %s155 = sphi 0, %s153
      %s156 = sphi 0, %s155
      %s170 = sphi 0, %s156
      %s174 = sphi 0, %s174
      %s176 = sphi 0, %s174
      %s177 = sphi 0, %s176
      %s191 = sphi 0, %s177
      %s199 = sphi 0, %s201
      %s202 = sphi 0, %s199
      %s203 = sphi 0, %s202
      %s219 = sphi 0, %s203
    $region4: #{tpu_custom_call.1} parent=1 // loop_header_branch
      %24 = sbr.rel (%p22) target = $region8
    $region5: #{tpu_custom_call.1} parent=1 // loop_body
      %s26 = ssub.s32 %s21, 1
      %s27 = ssub.s32 %s21, 2
      %s34 = sadd.s32 1, %s29
      %p35 = scmp.ge.s32.totalorder %s34, 2
      %s36 = scalar_select %p35, 0, %s34
      %s37 = sadd.s32 1, %s28
      %s38 = scalar_select %p35, %s37, %s28
      %p39 = scmp.ge.s32.totalorder %s38, 2
      %s40 = scalar_select %p39, 0, %s38
      %s41 = ssub.s32 %s28, %s40
      %s42 = ssub.s32 %s29, %s36
      %s43 = sor.u32 %s41, %s42
      %p44 = scmp.eq.s32.totalorder %s43, 0
      %s46 = sadd.s32 %s45, 1
      %s47 = scalar_select %p44, %s45, %s46
      %p50 = pneg %p44
      %p51 = scmp.eq.s32.totalorder %s21, 3
      %p52 = por %p50, %p51
      %p53 = scmp.ne.s32.totalorder %s45, %s48
      %p54 = scmp.eq.s32.totalorder %s21, 0
      %p55 = por %p53, %p54
      %p56 = scmp.ne.s32.totalorder %s45, %s48
      %p57 = scmp.eq.s32.totalorder %s26, 3
      %p58 = por %p56, %p57
      %p59 = scmp.ne.s32.totalorder %s48, %s49
      %p60 = scmp.eq.s32.totalorder %s26, 0
      %p61 = por %p59, %p60
      %p62 = scmp.ne.s32.totalorder %s48, %s49
      %p63 = scmp.eq.s32.totalorder %s27, 3
      %p64 = por %p62, %p63
      %p66 = scmp.ne.s32.totalorder %s49, %s65
      %p67 = scmp.eq.s32.totalorder %s27, 0
      %p68 = por %p66, %p67
      %s70 = sadd.s32 %s69, 1
      %p73 = scmp.eq.s32.totalorder %s21, 3
      %p74 = scmp.ne.s32.totalorder %s69, %s71
      %p75 = scmp.eq.s32.totalorder %s21, 0
      %p76 = por %p74, %p75
      %p77 = scmp.ne.s32.totalorder %s69, %s71
      %p78 = scmp.eq.s32.totalorder %s26, 3
      %p79 = por %p77, %p78
      %p80 = scmp.ne.s32.totalorder %s71, %s72
      %p81 = scmp.eq.s32.totalorder %s26, 0
      %p82 = por %p80, %p81
      %p83 = scmp.ne.s32.totalorder %s71, %s72
      %p84 = scmp.eq.s32.totalorder %s27, 3
      %p85 = por %p83, %p84
      %p87 = scmp.ne.s32.totalorder %s72, %s86
      %p88 = scmp.eq.s32.totalorder %s27, 0
      %p89 = por %p87, %p88
      %s91 = sadd.s32 %s90, 1
      %p94 = scmp.eq.s32.totalorder %s21, 3
      %p95 = scmp.ne.s32.totalorder %s90, %s92
      %p96 = scmp.eq.s32.totalorder %s21, 0
      %p97 = por %p95, %p96
      %p98 = scmp.ne.s32.totalorder %s90, %s92
      %p99 = scmp.eq.s32.totalorder %s26, 3
      %p100 = por %p98, %p99
      %p101 = scmp.ne.s32.totalorder %s92, %s93
      %p102 = scmp.eq.s32.totalorder %s26, 0
      %p103 = por %p101, %p102
      %p104 = scmp.ne.s32.totalorder %s92, %s93
      %p105 = scmp.eq.s32.totalorder %s27, 3
      %p106 = por %p104, %p105
      %p108 = scmp.ne.s32.totalorder %s93, %s107
      %p109 = scmp.eq.s32.totalorder %s27, 0
      %p110 = por %p108, %p109
      %s112 = sadd.s32 %s111, 1
      %p115 = scmp.eq.s32.totalorder %s21, 3
      %p116 = scmp.ne.s32.totalorder %s111, %s113
      %p117 = scmp.eq.s32.totalorder %s21, 0
      %p118 = por %p116, %p117
      %p119 = scmp.ne.s32.totalorder %s111, %s113
      %p120 = scmp.eq.s32.totalorder %s26, 3
      %p121 = por %p119, %p120
      %p122 = scmp.ne.s32.totalorder %s113, %s114
      %p123 = scmp.eq.s32.totalorder %s26, 0
      %p124 = por %p122, %p123
      %p125 = scmp.ne.s32.totalorder %s113, %s114
      %p126 = scmp.eq.s32.totalorder %s27, 3
      %p127 = por %p125, %p126
      %p129 = scmp.ne.s32.totalorder %s114, %s128
      %p130 = scmp.eq.s32.totalorder %s27, 0
      %p131 = por %p129, %p130
      %s133 = sadd.s32 %s132, 1
      %p136 = scmp.eq.s32.totalorder %s21, 3
      %p137 = scmp.ne.s32.totalorder %s132, %s134
      %p138 = scmp.eq.s32.totalorder %s21, 0
      %p139 = por %p137, %p138
      %p140 = scmp.ne.s32.totalorder %s132, %s134
      %p141 = scmp.eq.s32.totalorder %s26, 3
      %p142 = por %p140, %p141
      %p143 = scmp.ne.s32.totalorder %s134, %s135
      %p144 = scmp.eq.s32.totalorder %s26, 0
      %p145 = por %p143, %p144
      %p146 = scmp.ne.s32.totalorder %s134, %s135
      %p147 = scmp.eq.s32.totalorder %s27, 3
      %p148 = por %p146, %p147
      %p150 = scmp.ne.s32.totalorder %s135, %s149
      %p151 = scmp.eq.s32.totalorder %s27, 0
      %p152 = por %p150, %p151
      %s154 = sadd.s32 %s153, 1
      %p157 = scmp.eq.s32.totalorder %s21, 3
      %p158 = scmp.ne.s32.totalorder %s153, %s155
      %p159 = scmp.eq.s32.totalorder %s21, 0
      %p160 = por %p158, %p159
      %p161 = scmp.ne.s32.totalorder %s153, %s155
      %p162 = scmp.eq.s32.totalorder %s26, 3
      %p163 = por %p161, %p162
      %p164 = scmp.ne.s32.totalorder %s155, %s156
      %p165 = scmp.eq.s32.totalorder %s26, 0
      %p166 = por %p164, %p165
      %p167 = scmp.ne.s32.totalorder %s155, %s156
      %p168 = scmp.eq.s32.totalorder %s27, 3
      %p169 = por %p167, %p168
      %p171 = scmp.ne.s32.totalorder %s156, %s170
      %p172 = scmp.eq.s32.totalorder %s27, 0
      %p173 = por %p171, %p172
      %s175 = sadd.s32 %s174, 1
      %p178 = scmp.eq.s32.totalorder %s21, 3
      %p179 = scmp.ne.s32.totalorder %s174, %s176
      %p180 = scmp.eq.s32.totalorder %s21, 0
      %p181 = por %p179, %p180
      %p182 = scmp.ne.s32.totalorder %s174, %s176
      %p183 = scmp.eq.s32.totalorder %s26, 3
      %p184 = por %p182, %p183
      %p185 = scmp.ne.s32.totalorder %s176, %s177
      %p186 = scmp.eq.s32.totalorder %s26, 0
      %p187 = por %p185, %p186
      %p188 = scmp.ne.s32.totalorder %s176, %s177
      %p189 = scmp.eq.s32.totalorder %s27, 3
      %p190 = por %p188, %p189
      %p192 = scmp.ne.s32.totalorder %s177, %s191
      %p193 = scmp.eq.s32.totalorder %s27, 0
      %p194 = por %p192, %p193
      %s195 = ssub.s32 %s28, %s40
      %s196 = ssub.s32 %s29, %s36
      %s197 = sor.u32 %s195, %s196
      %p198 = scmp.eq.s32.totalorder %s197, 0
      %s200 = sadd.s32 %s199, 1
      %s201 = scalar_select %p198, %s199, %s200
      %p204 = pneg %p198
      %p205 = scmp.eq.s32.totalorder %s21, 3
      %p206 = por %p204, %p205
      %p207 = scmp.ne.s32.totalorder %s199, %s202
      %p208 = scmp.eq.s32.totalorder %s21, 0
      %p209 = por %p207, %p208
      %p210 = scmp.ne.s32.totalorder %s199, %s202
      %p211 = scmp.eq.s32.totalorder %s26, 3
      %p212 = por %p210, %p211
      %p213 = scmp.ne.s32.totalorder %s202, %s203
      %p214 = scmp.eq.s32.totalorder %s26, 0
      %p215 = por %p213, %p214
      %p216 = scmp.ne.s32.totalorder %s202, %s203
      %p217 = scmp.eq.s32.totalorder %s27, 3
      %p218 = por %p216, %p217
      %p220 = scmp.ne.s32.totalorder %s203, %s219
      %p221 = scmp.eq.s32.totalorder %s27, 0
      %p222 = por %p220, %p221
      %p223 = scmp.le.s32.totalorder 1, %s21
      %p224 = scmp.lt.s32.totalorder %s21, 5
      %p225 = pnand %p223, %p224
      %p226 = pneg %p225
      // Predicated region
      $region9: #{tpu_custom_call.1} parent=5 // pred_check
        _
      $region10: #{tpu_custom_call.1} parent=5 // pred_check_branch
        %228 = sbr.rel (%p225) target = $region12
      $region11: #{tpu_custom_call.1} parent=5 // pred_region
        %s229 = ssub.s32 %s21, 1
        // Predicated region
        $region13: #{tpu_custom_call.1} parent=11 // pred_check
          %p230 = pneg %p82
        $region14: #{tpu_custom_call.1} parent=11 // pred_check_branch
          %232 = sbr.rel (%p230) target = $region16
        $region15: #{tpu_custom_call.1} parent=11 // pred_region
          %234 = vsyncadd [#allocation11], 0
          %s235 = sshll.u32 %s1, 4
          %s236 = int_to_ptr.hbm [resolvable:$true] %s235
          %s237 = sshll.u32 [#allocation10], 4
          %s238 = int_to_ptr.vmem [resolvable:$true] %s237
          %243 = dma.hbm_to_vmem [thread:$0]  %s236, 1024, %s238, [#allocation11], 256, 256, 16
        $region16: #{tpu_custom_call.1} parent=11 // pred_fallthru
          _
        // Predicated region
        $region17: #{tpu_custom_call.1} parent=11 // pred_check
          %p244 = pneg %p103
        $region18: #{tpu_custom_call.1} parent=11 // pred_check_branch
          %246 = sbr.rel (%p244) target = $region20
        $region19: #{tpu_custom_call.1} parent=11 // pred_region
          %248 = vsyncadd [#allocation11], 0
          %s249 = sshll.u32 %s2, 4
          %s250 = int_to_ptr.hbm [resolvable:$true] %s249
          %s251 = sshll.u32 [#allocation12], 4
          %s252 = int_to_ptr.vmem [resolvable:$true] %s251
          %257 = dma.hbm_to_vmem [thread:$0]  %s250, 128, %s252, [#allocation11], 64, 64, 4
        $region20: #{tpu_custom_call.1} parent=11 // pred_fallthru
          _
        // Predicated region
        $region21: #{tpu_custom_call.1} parent=11 // pred_check
          %p258 = pneg %p124
        $region22: #{tpu_custom_call.1} parent=11 // pred_check_branch
          %260 = sbr.rel (%p258) target = $region24
        $region23: #{tpu_custom_call.1} parent=11 // pred_region
          %262 = vsyncadd [#allocation14], 0
          %s264 = sshll.u32 %s3, 4
          %s265 = int_to_ptr.hbm [resolvable:$true] %s264
          %s266 = sshll.u32 [#allocation13], 4
          %s267 = int_to_ptr.vmem [resolvable:$true] %s266
          %269 = dma.hbm_to_vmem [thread:$0]  %s265, 128, %s267, [#allocation14]
        $region24: #{tpu_custom_call.1} parent=11 // pred_fallthru
          _
        // Predicated region
        $region25: #{tpu_custom_call.1} parent=11 // pred_check
          %p270 = pneg %p145
        $region26: #{tpu_custom_call.1} parent=11 // pred_check_branch
          %272 = sbr.rel (%p270) target = $region28
        $region27: #{tpu_custom_call.1} parent=11 // pred_region
          _
        $region28: #{tpu_custom_call.1} parent=11 // pred_fallthru
          _
        // Predicated region
        $region29: #{tpu_custom_call.1} parent=11 // pred_check
          %p273 = pneg %p166
        $region30: #{tpu_custom_call.1} parent=11 // pred_check_branch
          %275 = sbr.rel (%p273) target = $region32
        $region31: #{tpu_custom_call.1} parent=11 // pred_region
          _
        $region32: #{tpu_custom_call.1} parent=11 // pred_fallthru
          _
        // Predicated region
        $region33: #{tpu_custom_call.1} parent=11 // pred_check
          %p276 = pneg %p187
        $region34: #{tpu_custom_call.1} parent=11 // pred_check_branch
          %278 = sbr.rel (%p276) target = $region36
        $region35: #{tpu_custom_call.1} parent=11 // pred_region
          %280 = vsyncadd [#allocation14], 0
          %s281 = sshll.u32 %s6, 4
          %s282 = int_to_ptr.hbm [resolvable:$true] %s281
          %s283 = sshll.u32 [#allocation15], 4
          %s284 = int_to_ptr.vmem [resolvable:$true] %s283
          %289 = dma.hbm_to_vmem [thread:$0]  %s282, 256, %s284, [#allocation14], 64, 64, 4
        $region36: #{tpu_custom_call.1} parent=11 // pred_fallthru
          _
      $region12: #{tpu_custom_call.1} parent=5 // pred_fallthru
        _
      %p290 = scmp.lt.s32.totalorder %s21, 4
      // Predicated region
      $region37: #{tpu_custom_call.1} parent=5 // pred_check
        %p291 = pneg %p290
      $region38: #{tpu_custom_call.1} parent=5 // pred_check_branch
        %293 = sbr.rel (%p291) target = $region40
      $region39: #{tpu_custom_call.1} parent=5 // pred_region
        // Predicated region
        $region41: #{tpu_custom_call.1} parent=39 // pred_check
          %p294 = pneg %p55
        $region42: #{tpu_custom_call.1} parent=39 // pred_check_branch
          %296 = sbr.rel (%p294) target = $region44
        $region43: #{tpu_custom_call.1} parent=39 // pred_region
          %s297 = sand.u32 %s45, 1
          %s298 = scalar_lea.sflag [#allocation8], %s297
          %s299 = sand.u32 %s45, 1
          %s300 = smul.addr %s299, 8
          %s301 = scalar_lea.vmem [#allocation7], %s300
          %303 = vsyncadd %s298, 0
          %s304 = smul.addr %s28, 2
          %s305 = sadd.s32 %s29, %s304
          %s306 = smul.addr %s305, 8
          %s307 = scalar_lea.hbm %s0, %s306
          %s309 = sshll.u32 %s307, 4
          %s310 = int_to_ptr.hbm [resolvable:$true] %s309
          %s311 = sshll.u32 %s301, 4
          %s312 = int_to_ptr.vmem [resolvable:$true] %s311
          %314 = dma.hbm_to_vmem [thread:$0]  %s310, 128, %s312, %s298
        $region44: #{tpu_custom_call.1} parent=39 // pred_fallthru
          _
      $region40: #{tpu_custom_call.1} parent=5 // pred_fallthru
        _
      %p315 = scmp.le.s32.totalorder 1, %s21
      %p316 = scmp.lt.s32.totalorder %s21, 5
      %p317 = pnand %p315, %p316
      %p318 = pneg %p317
      // Predicated region
      $region45: #{tpu_custom_call.1} parent=5 // pred_check
        _
      $region46: #{tpu_custom_call.1} parent=5 // pred_check_branch
        %320 = sbr.rel (%p317) target = $region48
      $region47: #{tpu_custom_call.1} parent=5 // pred_region
        %s321 = ssub.s32 %s21, 1
        %s322 = sand.u32 %s48, 1
        %s323 = scalar_lea.sflag [#allocation8], %s322
        %s324 = sand.u32 %s48, 1
        %s325 = smul.addr %s324, 8
        %s326 = scalar_lea.vmem [#allocation7], %s325
        // Predicated region
        $region49: #{tpu_custom_call.1} parent=47 // pred_check
          %p327 = pneg %p61
        $region50: #{tpu_custom_call.1} parent=47 // pred_check_branch
          %329 = sbr.rel (%p327) target = $region52
        $region51: #{tpu_custom_call.1} parent=47 // pred_region
          %331 = dma.done %s323, 128
        $region52: #{tpu_custom_call.1} parent=47 // pred_fallthru
          _
        // Predicated region
        $region53: #{tpu_custom_call.1} parent=47 // pred_check
          %p332 = pneg %p82
        $region54: #{tpu_custom_call.1} parent=47 // pred_check_branch
          %334 = sbr.rel (%p332) target = $region56
        $region55: #{tpu_custom_call.1} parent=47 // pred_region
          %336 = dma.done [#allocation11], 1024
        $region56: #{tpu_custom_call.1} parent=47 // pred_fallthru
          _
        // Predicated region
        $region57: #{tpu_custom_call.1} parent=47 // pred_check
          %p337 = pneg %p103
        $region58: #{tpu_custom_call.1} parent=47 // pred_check_branch
          %339 = sbr.rel (%p337) target = $region60
        $region59: #{tpu_custom_call.1} parent=47 // pred_region
          %341 = dma.done [#allocation11], 128
        $region60: #{tpu_custom_call.1} parent=47 // pred_fallthru
          _
        // Predicated region
        $region61: #{tpu_custom_call.1} parent=47 // pred_check
          %p342 = pneg %p124
        $region62: #{tpu_custom_call.1} parent=47 // pred_check_branch
          %344 = sbr.rel (%p342) target = $region64
        $region63: #{tpu_custom_call.1} parent=47 // pred_region
          %346 = dma.done [#allocation14], 128
        $region64: #{tpu_custom_call.1} parent=47 // pred_fallthru
          _
        // Predicated region
        $region65: #{tpu_custom_call.1} parent=47 // pred_check
          %p347 = pneg %p187
        $region66: #{tpu_custom_call.1} parent=47 // pred_check_branch
          %349 = sbr.rel (%p347) target = $region68
        $region67: #{tpu_custom_call.1} parent=47 // pred_region
          %351 = dma.done [#allocation14], 256
        $region68: #{tpu_custom_call.1} parent=47 // pred_fallthru
          _
        %s352 = sand.u32 %s48, 1
        %s353 = scalar_lea.sflag [#allocation8], %s352
        %s354 = sand.u32 %s48, 1
        %s355 = smul.addr %s354, 8
        %s356 = scalar_lea.vmem [#allocation7], %s355
        %p357 = pneg %p61
        %p358 = pneg %p58
        %p359 = pneg %p82
        %p360 = pneg %p79
        %p361 = pneg %p103
        %p362 = pneg %p100
        %p363 = pneg %p124
        %p364 = pneg %p121
        %p365 = pneg %p145
        %p366 = pneg %p142
        %p367 = pneg %p166
        %p368 = pneg %p163
        %p369 = pneg %p187
        %p370 = pneg %p184
        %p371 = pneg %p215
        %p372 = pneg %p212
        %s373 = sand.u32 %s202, 1
        %s374 = scalar_lea.sflag [#allocation9], %s373
        %s375 = sand.u32 %s202, 1
        %s376 = smul.addr %s375, 8
        %s377 = scalar_lea.vmem [#allocation16], %s376
        %p379 = scmp.eq.s32.totalorder %s31, 0
        // Predicated region
        $region69: #{tpu_custom_call.1} parent=47 // pred_check
          %p380 = pneg %p379
        $region70: #{tpu_custom_call.1} parent=47 // pred_check_branch
          %382 = sbr.rel (%p380) target = $region72
        $region71: #{tpu_custom_call.1} parent=47 // pred_region
          %vm383 = vcmask 261120
          %384 = vst.msk [vmem:[#allocation2] sm:$0xff] %vm383, 0.0
        $region72: #{tpu_custom_call.1} parent=47 // pred_fallthru
          _
        %v385 = vld [vmem:[%s326] sm:$0xff]
        %v386 = vpack.c.bf16 %v385, %v385
        %v387 = vld [vmem:[#allocation10] sm:$0xff]
        %v388 = vld [vmem:[#allocation10 + $0x8] sm:$0xff]
        %v389 = vld [vmem:[#allocation10 + $0x10] sm:$0xff]
        %v390 = vld [vmem:[#allocation10 + $0x18] sm:$0xff]
        %v391 = vld [vmem:[#allocation10 + $0x20] sm:$0xff]
        %v392 = vld [vmem:[#allocation10 + $0x28] sm:$0xff]
        %v393 = vld [vmem:[#allocation10 + $0x30] sm:$0xff]
        %v394 = vld [vmem:[#allocation10 + $0x38] sm:$0xff]
        %v403 = vunpack.c.l.b16 %v387
        %v404 = vunpack.c.h.b16 %v387
        %v405 = vunpack.c.l.b16 %v388
        %v406 = vunpack.c.h.b16 %v388
        %v407 = vunpack.c.l.b16 %v389
        %v408 = vunpack.c.h.b16 %v389
        %v409 = vunpack.c.l.b16 %v390
        %v410 = vunpack.c.h.b16 %v390
        %v411 = vunpack.c.l.b16 %v391
        %v412 = vunpack.c.h.b16 %v391
        %v413 = vunpack.c.l.b16 %v392
        %v414 = vunpack.c.h.b16 %v392
        %v415 = vunpack.c.l.b16 %v393
        %v416 = vunpack.c.h.b16 %v393
        %v417 = vunpack.c.l.b16 %v394
        %v418 = vunpack.c.h.b16 %v394
        %v419 = vpack.c.b16 %v407, %v403
        %v420 = vpack.c.b16 %v408, %v404
        %v421 = vpack.c.b16 %v409, %v405
        %v422 = vpack.c.b16 %v410, %v406
        %v423 = vpack.c.b16 %v415, %v411
        %v424 = vpack.c.b16 %v416, %v412
        %v425 = vpack.c.b16 %v417, %v413
        %v426 = vpack.c.b16 %v418, %v414
        %vm435 = vcmask 261120
        %v437 = vsel %vm435, %v386, 0
        %439 = vmatpush.bf16.msra.mxu0 0
        %440 = vmatpush.bf16.msra.mxu0 0
        %441 = vmatpush.bf16.msra.mxu0 0
        %442 = vmatpush.bf16.msra.mxu0 0
        %443 = vmatpush.bf16.msra.mxu0 0
        %444 = vmatpush.bf16.msra.mxu0 0
        %445 = vmatpush.bf16.msra.mxu0 %v423
        %446 = vmatpush.bf16.msra.mxu0 %v419
        %447 = vmatmul.bf16.gmra.mxu0 %v437
        %v448 = vpop.f32.mrf.mxu0
        %v449 = vadd.f32 0.0, %v448
        %v450 = vpop.f32.mrf.mxu0
        %451 = vdwg.mxu0
        %452 = vmatpush.bf16.msra.mxu0 0
        %453 = vmatpush.bf16.msra.mxu0 0
        %454 = vmatpush.bf16.msra.mxu0 0
        %455 = vmatpush.bf16.msra.mxu0 0
        %456 = vmatpush.bf16.msra.mxu0 0
        %457 = vmatpush.bf16.msra.mxu0 0
        %458 = vmatpush.bf16.msra.mxu0 %v424
        %459 = vmatpush.bf16.msra.mxu0 %v420
        %460 = vmatmul.bf16.gmra.mxu0 %v437
        %v461 = vpop.f32.mrf.mxu0
        %v462 = vadd.f32 0.0, %v461
        %v463 = vpop.f32.mrf.mxu0
        %464 = vdwg.mxu0
        %465 = vmatpush.bf16.msra.mxu0 0
        %466 = vmatpush.bf16.msra.mxu0 0
        %467 = vmatpush.bf16.msra.mxu0 0
        %468 = vmatpush.bf16.msra.mxu0 0
        %469 = vmatpush.bf16.msra.mxu0 0
        %470 = vmatpush.bf16.msra.mxu0 0
        %471 = vmatpush.bf16.msra.mxu0 %v425
        %472 = vmatpush.bf16.msra.mxu0 %v421
        %473 = vmatmul.bf16.gmra.mxu0 %v437
        %v474 = vpop.f32.mrf.mxu0
        %v475 = vadd.f32 0.0, %v474
        %v476 = vpop.f32.mrf.mxu0
        %477 = vdwg.mxu0
        %478 = vmatpush.bf16.msra.mxu0 0
        %479 = vmatpush.bf16.msra.mxu0 0
        %480 = vmatpush.bf16.msra.mxu0 0
        %481 = vmatpush.bf16.msra.mxu0 0
        %482 = vmatpush.bf16.msra.mxu0 0
        %483 = vmatpush.bf16.msra.mxu0 0
        %484 = vmatpush.bf16.msra.mxu0 %v426
        %485 = vmatpush.bf16.msra.mxu0 %v422
        %486 = vmatmul.bf16.gmra.mxu0 %v437
        %v487 = vpop.f32.mrf.mxu0
        %v488 = vadd.f32 0.0, %v487
        %v489 = vpop.f32.mrf.mxu0
        %490 = vdwg.mxu0
        %v491 = vpack.c.bf16 %v462, %v462
        %v492 = vld [vmem:[#allocation12] sm:$0xf]
        %v493 = vld [vmem:[#allocation12 + $0x4] sm:$0xf]
        %v496 = vunpack.c.l.b16 %v492
        %v497 = vunpack.c.l.b16 %v493
        %v498 = vpack.c.b16 %v497, %v496
        %vm500 = vcmask 130048
        %v502 = vsel %vm500, %v491, 0
        %504 = vmatpush.bf16.msra.mxu0 0
        %505 = vmatpush.bf16.msra.mxu0 0
        %506 = vmatpush.bf16.msra.mxu0 0
        %507 = vmatpush.bf16.msra.mxu0 0
        %508 = vmatpush.bf16.msra.mxu0 0
        %509 = vmatpush.bf16.msra.mxu0 0
        %510 = vmatpush.bf16.msra.mxu0 0
        %511 = vmatpush.bf16.msra.mxu0 %v498
        %512 = vmatmul.bf16.gmra.mxu0 %v502
        %v513 = vpop.f32.mrf.mxu0
        %v514 = vadd.f32 0.0, %v513
        %v515 = vpop.f32.mrf.mxu0
        %516 = vdwg.mxu0
        %v517 = vmax.f32 %v514, 0.0
        %vm518 = vcmp.ne.f32.partialorder %v514, %v514
        %v519 = vadd.f32 %v514, 0.0
        %v520 = vand.u32 2147483647, %v514
        %v521 = vsub.f32 0.0, %v520
        %v522 = vmul.f32 %v521, 1.442695
        %v523 = vpow.pop %v522
        %v524 = vadd.f32 %v523, 1.0
        %v525 = vlog2.pop %v524
        %v526 = vmul.f32 %v525, 0.6931472
        %v527 = vmul.f32 -0.5, %v523
        %v528 = vadd.f32 %v527, 1.0
        %v529 = vmul.f32 %v528, %v523
        %v530 = vand.u32 2147483647, %v523
        %vm531 = vcmp.lt.f32.partialorder %v530, 0.0004427343
        %v532 = vsel %vm531, %v529, %v526
        %v533 = vadd.f32 %v517, %v532
        %v534 = vsel %vm518, %v519, %v533
        %535 = vst.msk [vmem:[#allocation3] sm:$0xff] %vm435, %v534
        %v536 = vmul.f32 %v534, %v449
        %537 = vst.msk [vmem:[#allocation4] sm:$0xff] %vm435, %v536
        %539 = vrot.lane.b32.xlu0 %v488, 8
        %v540 = vpop.permute.xlu0 %539
        %vm542 = vcmask 64512
        %v543 = vsel %vm542, %v475, %v540
        %544 = vst.msk [vmem:[#allocation5] sm:$0xff] %vm500, %v543
        %v545 = vld [vmem:[#allocation13] sm:$0xff]
        %v546 = vld [vmem:[#allocation2] sm:$0xff]
        %v547 = vld [vmem:[#allocation3] sm:$0xff]
        %v548 = vld [vmem:[#allocation4] sm:$0xff]
        %v549 = vld [vmem:[#allocation5] sm:$0xff]
        %550 = vxpose.xlu0.b32.start [1/16] %v549, 128
        %551 = vxpose.xlu0.b32.cont [2/16] 0.0, 128
        %552 = vxpose.xlu0.b32.cont [3/16] 0.0, 128
        %553 = vxpose.xlu0.b32.cont [4/16] 0.0, 128
        %554 = vxpose.xlu0.b32.cont [5/16] 0.0, 128
        %555 = vxpose.xlu0.b32.cont [6/16] 0.0, 128
        %556 = vxpose.xlu0.b32.cont [7/16] 0.0, 128
        %557 = vxpose.xlu0.b32.cont [8/16] 0.0, 128
        %558 = vxpose.xlu0.b32.cont [9/16] 0.0, 128
        %559 = vxpose.xlu0.b32.cont [10/16] 0.0, 128
        %560 = vxpose.xlu0.b32.cont [11/16] 0.0, 128
        %561 = vxpose.xlu0.b32.cont [12/16] 0.0, 128
        %562 = vxpose.xlu0.b32.cont [13/16] 0.0, 128
        %563 = vxpose.xlu0.b32.cont [14/16] 0.0, 128
        %564 = vxpose.xlu0.b32.cont [15/16] 0.0, 128
        %565 = vxpose.xlu0.b32.end [16/16] 0.0, 128
        %v566 = vpop.trf.xlu0
        %v567 = vpop.trf.xlu0
        %v568 = vpop.trf.xlu0
        %v569 = vpop.trf.xlu0
        %v570 = vpop.trf.xlu0
        %v571 = vpop.trf.xlu0
        %v572 = vpop.trf.xlu0
        %v573 = vpop.trf.xlu0
        %v574 = vpop.trf.xlu0
        %v575 = vpop.trf.xlu0
        %v576 = vpop.trf.xlu0
        %v577 = vpop.trf.xlu0
        %v578 = vpop.trf.xlu0
        %v579 = vpop.trf.xlu0
        %v580 = vpop.trf.xlu0
        %v581 = vpop.trf.xlu0
        %v582 = vperm.slane %v547, 0
        %v583 = vmul.f32 %v582, %v545
        %v584 = vmul.f32 %v583, 1.442695
        %v585 = vpow.pop %v584
        %v586 = vmul.f32 %v585, %v546
        %588 = vset.pattern.permute.xlu0 0
        %589 = vperm.xlu0 %588, %v566
        %v590 = vpop.permute.xlu0 %589
        %v592 = vperm.slane %v548, 0
        %v593 = vmul.f32 %v590, %v592
        %v594 = vadd.f32 %v586, %v593
        %596 = vset.pattern.permute.xlu0 0
        %597 = vperm.xlu0 %596, %v567
        %v598 = vpop.permute.xlu0 %597
        %v600 = vmul.f32 %v598, %v594
        %v601 = vsel %vm435, %v600, 0.0
        %v602 = vrot.slane %v601, 4
        %v603 = vadd.f32 %v601, %v602
        %v604 = vrot.slane %v603, 2
        %v605 = vadd.f32 %v603, %v604
        %v606 = vrot.slane %v605, 1
        %v607 = vadd.f32 %v605, %v606
        %v608 = vperm.slane %v547, 1
        %v609 = vmul.f32 %v608, %v545
        %v610 = vmul.f32 %v609, 1.442695
        %v611 = vpow.pop %v610
        %v612 = vmul.f32 %v611, %v594
        %613 = vset.pattern.permute.xlu0 1
        %614 = vperm.xlu0 %613, %v566
        %v615 = vpop.permute.xlu0 %614
        %v617 = vperm.slane %v548, 1
        %v618 = vmul.f32 %v615, %v617
        %v619 = vadd.f32 %v612, %v618
        %620 = vset.pattern.permute.xlu0 1
        %621 = vperm.xlu0 %620, %v567
        %v622 = vpop.permute.xlu0 %621
        %v624 = vmul.f32 %v622, %v619
        %v625 = vsel %vm435, %v624, 0.0
        %v626 = vrot.slane %v625, 4
        %v627 = vadd.f32 %v625, %v626
        %v628 = vrot.slane %v627, 2
        %v629 = vadd.f32 %v627, %v628
        %v630 = vrot.slane %v629, 1
        %v631 = vadd.f32 %v629, %v630
        %v632 = vperm.slane %v547, 2
        %v633 = vmul.f32 %v632, %v545
        %v634 = vmul.f32 %v633, 1.442695
        %v635 = vpow.pop %v634
        %v636 = vmul.f32 %v635, %v619
        %637 = vset.pattern.permute.xlu0 2
        %638 = vperm.xlu0 %637, %v566
        %v639 = vpop.permute.xlu0 %638
        %v641 = vperm.slane %v548, 2
        %v642 = vmul.f32 %v639, %v641
        %v643 = vadd.f32 %v636, %v642
        %644 = vset.pattern.permute.xlu0 2
        %645 = vperm.xlu0 %644, %v567
        %v646 = vpop.permute.xlu0 %645
        %v648 = vmul.f32 %v646, %v643
        %v649 = vsel %vm435, %v648, 0.0
        %v650 = vrot.slane %v649, 4
        %v651 = vadd.f32 %v649, %v650
        %v652 = vrot.slane %v651, 2
        %v653 = vadd.f32 %v651, %v652
        %v654 = vrot.slane %v653, 1
        %v655 = vadd.f32 %v653, %v654
        %v656 = vperm.slane %v547, 3
        %v657 = vmul.f32 %v656, %v545
        %v658 = vmul.f32 %v657, 1.442695
        %v659 = vpow.pop %v658
        %v660 = vmul.f32 %v659, %v643
        %661 = vset.pattern.permute.xlu0 3
        %662 = vperm.xlu0 %661, %v566
        %v663 = vpop.permute.xlu0 %662
        %v665 = vperm.slane %v548, 3
        %v666 = vmul.f32 %v663, %v665
        %v667 = vadd.f32 %v660, %v666
        %668 = vset.pattern.permute.xlu0 3
        %669 = vperm.xlu0 %668, %v567
        %v670 = vpop.permute.xlu0 %669
        %v672 = vmul.f32 %v670, %v667
        %v673 = vsel %vm435, %v672, 0.0
        %v674 = vrot.slane %v673, 4
        %v675 = vadd.f32 %v673, %v674
        %v676 = vrot.slane %v675, 2
        %v677 = vadd.f32 %v675, %v676
        %v678 = vrot.slane %v677, 1
        %v679 = vadd.f32 %v677, %v678
        %v680 = vperm.slane %v547, 4
        %v681 = vmul.f32 %v680, %v545
        %v682 = vmul.f32 %v681, 1.442695
        %v683 = vpow.pop %v682
        %v684 = vmul.f32 %v683, %v667
        %685 = vset.pattern.permute.xlu0 4
        %686 = vperm.xlu0 %685, %v566
        %v687 = vpop.permute.xlu0 %686
        %v689 = vperm.slane %v548, 4
        %v690 = vmul.f32 %v687, %v689
        %v691 = vadd.f32 %v684, %v690
        %692 = vset.pattern.permute.xlu0 4
        %693 = vperm.xlu0 %692, %v567
        %v694 = vpop.permute.xlu0 %693
        %v696 = vmul.f32 %v694, %v691
        %v697 = vsel %vm435, %v696, 0.0
        %v698 = vrot.slane %v697, 4
        %v699 = vadd.f32 %v697, %v698
        %v700 = vrot.slane %v699, 2
        %v701 = vadd.f32 %v699, %v700
        %v702 = vrot.slane %v701, 1
        %v703 = vadd.f32 %v701, %v702
        %v704 = vperm.slane %v547, 5
        %v705 = vmul.f32 %v704, %v545
        %v706 = vmul.f32 %v705, 1.442695
        %v707 = vpow.pop %v706
        %v708 = vmul.f32 %v707, %v691
        %709 = vset.pattern.permute.xlu0 5
        %710 = vperm.xlu0 %709, %v566
        %v711 = vpop.permute.xlu0 %710
        %v713 = vperm.slane %v548, 5
        %v714 = vmul.f32 %v711, %v713
        %v715 = vadd.f32 %v708, %v714
        %716 = vset.pattern.permute.xlu0 5
        %717 = vperm.xlu0 %716, %v567
        %v718 = vpop.permute.xlu0 %717
        %v720 = vmul.f32 %v718, %v715
        %v721 = vsel %vm435, %v720, 0.0
        %v722 = vrot.slane %v721, 4
        %v723 = vadd.f32 %v721, %v722
        %v724 = vrot.slane %v723, 2
        %v725 = vadd.f32 %v723, %v724
        %v726 = vrot.slane %v725, 1
        %v727 = vadd.f32 %v725, %v726
        %v728 = vperm.slane %v547, 6
        %v729 = vmul.f32 %v728, %v545
        %v730 = vmul.f32 %v729, 1.442695
        %v731 = vpow.pop %v730
        %v732 = vmul.f32 %v731, %v715
        %733 = vset.pattern.permute.xlu0 6
        %734 = vperm.xlu0 %733, %v566
        %v735 = vpop.permute.xlu0 %734
        %v737 = vperm.slane %v548, 6
        %v738 = vmul.f32 %v735, %v737
        %v739 = vadd.f32 %v732, %v738
        %740 = vset.pattern.permute.xlu0 6
        %741 = vperm.xlu0 %740, %v567
        %v742 = vpop.permute.xlu0 %741
        %v744 = vmul.f32 %v742, %v739
        %v745 = vsel %vm435, %v744, 0.0
        %v746 = vrot.slane %v745, 4
        %v747 = vadd.f32 %v745, %v746
        %v748 = vrot.slane %v747, 2
        %v749 = vadd.f32 %v747, %v748
        %v750 = vrot.slane %v749, 1
        %v751 = vadd.f32 %v749, %v750
        %v752 = vperm.slane %v547, 7
        %v753 = vmul.f32 %v752, %v545
        %v754 = vmul.f32 %v753, 1.442695
        %v755 = vpow.pop %v754
        %v756 = vmul.f32 %v755, %v739
        %757 = vset.pattern.permute.xlu0 7
        %758 = vperm.xlu0 %757, %v566
        %v759 = vpop.permute.xlu0 %758
        %v761 = vperm.slane %v548, 7
        %v762 = vmul.f32 %v759, %v761
        %v763 = vadd.f32 %v756, %v762
        %764 = vset.pattern.permute.xlu0 7
        %765 = vperm.xlu0 %764, %v567
        %v766 = vpop.permute.xlu0 %765
        %v768 = vmul.f32 %v766, %v763
        %v769 = vsel %vm435, %v768, 0.0
        %v770 = vrot.slane %v769, 4
        %v771 = vadd.f32 %v769, %v770
        %v772 = vrot.slane %v771, 2
        %v773 = vadd.f32 %v771, %v772
        %v774 = vrot.slane %v773, 1
        %v775 = vadd.f32 %v773, %v774
        %vm776 = vcmask 1040384
        %v777 = vsel %vm776, %v607, %v631
        %vm778 = vcmask 1041408
        %v779 = vsel %vm778, %v777, %v655
        %vm780 = vcmask 1042432
        %v781 = vsel %vm780, %v779, %v679
        %vm782 = vcmask 1043456
        %v783 = vsel %vm782, %v781, %v703
        %vm784 = vcmask 1044480
        %v785 = vsel %vm784, %v783, %v727
        %vm786 = vcmask 1045504
        %v787 = vsel %vm786, %v785, %v751
        %vm788 = vcmask 1046528
        %v789 = vsel %vm788, %v787, %v775
        %790 = vst.msk [vmem:[#allocation6] sm:$0xff] %vm435, %v789
        %791 = vst.msk [vmem:[#allocation2] sm:$0xff] %vm435, %v763
        %v792 = vld [vmem:[#allocation6] sm:$0xff]
        %v793 = vsel %vm435, %v792, 0.0
        %794 = vadd.xlane.f32.xlu0 %v793
        %v795 = vpop.xlane.xlu0 %794
        %v796 = vrcp.pop 32.0
        %v797 = vmul.f32 32.0, %v796
        %v798 = vsub.f32 1.0, %v797
        %v799 = vmul.f32 %v796, %v798
        %v800 = vadd.f32 %v796, %v799
        %vm801 = vweird.f32 %v796
        %v802 = vsel %vm801, %v796, %v800
        %v803 = vmul.f32 %v795, %v802
        %v804 = vsub.f32 %v792, %v803
        %v805 = vmul.f32 %v804, %v804
        %v806 = vsel %vm435, %v805, 0.0
        %807 = vadd.xlane.f32.xlu0 %v806
        %v808 = vpop.xlane.xlu0 %807
        %v809 = vmul.f32 %v808, %v802
        %v810 = vadd.f32 %v809, 1e-05
        %v811 = vrsqrt.pop %v810
        %v812 = vmul.f32 %v811, %v810
        %v813 = vmul.f32 %v812, %v811
        %v814 = vmul.f32 0.5, %v813
        %v815 = vsub.f32 1.5, %v814
        %v816 = vmul.f32 %v811, %v815
        %vm817 = vweird.f32 %v810
        %vm818 = vweird.f32 %v811
        %vm819 = vmor %vm817, %vm818
        %v820 = vsel %vm819, %v811, %v816
        %v821 = vmul.f32 %v804, %v820
        %v822 = vld [vmem:[%s4] sm:$0x1]
        %v824 = vperm.slane %v822, 0
        %v826 = vmul.f32 %v821, %v824
        %v827 = vld [vmem:[%s5] sm:$0x1]
        %v829 = vperm.slane %v827, 0
        %v831 = vadd.f32 %v826, %v829
        %v832 = vpack.c.bf16 %v831, %v831
        %v833 = vld [vmem:[#allocation15] sm:$0xf]
        %v834 = vld [vmem:[#allocation15 + $0x4] sm:$0xf]
        %v835 = vld [vmem:[#allocation15 + $0x8] sm:$0xf]
        %v836 = vld [vmem:[#allocation15 + $0xc] sm:$0xf]
        %v841 = vunpack.c.l.b16 %v833
        %v842 = vunpack.c.l.b16 %v834
        %v843 = vunpack.c.l.b16 %v835
        %v844 = vunpack.c.l.b16 %v836
        %v845 = vpack.c.b16 %v842, %v841
        %v846 = vpack.c.b16 %v844, %v843
        %v850 = vsel %vm435, %v832, 0
        %852 = vmatpush.bf16.msra.mxu0 0
        %853 = vmatpush.bf16.msra.mxu0 0
        %854 = vmatpush.bf16.msra.mxu0 0
        %855 = vmatpush.bf16.msra.mxu0 0
        %856 = vmatpush.bf16.msra.mxu0 0
        %857 = vmatpush.bf16.msra.mxu0 0
        %858 = vmatpush.bf16.msra.mxu0 %v846
        %859 = vmatpush.bf16.msra.mxu0 %v845
        %860 = vmatmul.bf16.gmra.mxu0 %v850
        %v861 = vpop.f32.mrf.mxu0
        %v862 = vadd.f32 0.0, %v861
        %v863 = vpop.f32.mrf.mxu0
        %864 = vdwg.mxu0
        %865 = vst.msk [vmem:[%s377] sm:$0xff] %vm435, %v862
        %s866 = sand.u32 %s202, 1
        %s867 = scalar_lea.sflag [#allocation9], %s866
        %s868 = sand.u32 %s202, 1
        %s869 = smul.addr %s868, 8
        %s870 = scalar_lea.vmem [#allocation16], %s869
        // Predicated region
        $region73: #{tpu_custom_call.1} parent=47 // pred_check
          %p871 = pneg %p212
        $region74: #{tpu_custom_call.1} parent=47 // pred_check_branch
          %873 = sbr.rel (%p871) target = $region76
        $region75: #{tpu_custom_call.1} parent=47 // pred_region
          %875 = vsyncadd %s867, 0
          %s876 = smul.addr %s30, 2
          %s877 = sadd.s32 %s31, %s876
          %s878 = smul.addr %s877, 8
          %s879 = scalar_lea.hbm %s7, %s878
          %s881 = sshll.u32 %s870, 4
          %s882 = int_to_ptr.vmem [resolvable:$true] %s881
          %s883 = sshll.u32 %s879, 4
          %s884 = int_to_ptr.hbm [resolvable:$true] %s883
          %886 = dma.vmem_to_hbm [thread:$0]  %s882, 128, %s884, %s867
        $region76: #{tpu_custom_call.1} parent=47 // pred_fallthru
          _
      $region48: #{tpu_custom_call.1} parent=5 // pred_fallthru
        _
      %p887 = scmp.le.s32.totalorder 2, %s21
      // Predicated region
      $region77: #{tpu_custom_call.1} parent=5 // pred_check
        %p888 = pneg %p887
      $region78: #{tpu_custom_call.1} parent=5 // pred_check_branch
        %890 = sbr.rel (%p888) target = $region80
      $region79: #{tpu_custom_call.1} parent=5 // pred_region
        %s891 = ssub.s32 %s21, 2
        // Predicated region
        $region81: #{tpu_custom_call.1} parent=79 // pred_check
          %p892 = pneg %p218
        $region82: #{tpu_custom_call.1} parent=79 // pred_check_branch
          %894 = sbr.rel (%p892) target = $region84
        $region83: #{tpu_custom_call.1} parent=79 // pred_region
          %s895 = sand.u32 %s203, 1
          %s896 = scalar_lea.sflag [#allocation9], %s895
          %s897 = sand.u32 %s203, 1
          %s898 = smul.addr %s897, 8
          %s899 = scalar_lea.vmem [#allocation16], %s898
          %901 = dma.done %s896, 128
        $region84: #{tpu_custom_call.1} parent=79 // pred_fallthru
          _
      $region80: #{tpu_custom_call.1} parent=5 // pred_fallthru
        _
    $region6: #{tpu_custom_call.1} parent=1 // loop_footer
      %s25 = sadd.s32 1, %s21
    $region7: #{tpu_custom_call.1} parent=1 // loop_footer_branch
      %20 = sbr.rel target = $region3
    $region8: #{tpu_custom_call.1} parent=1 // loop_exit
      _
    %902 = vsyncpa [#allocation8], 1
    %s903 = scalar_lea.sflag [#allocation8], 1
    %904 = vsyncpa %s903, 1
    %905 = vsyncpa [#allocation11], 1
    %906 = vsyncpa [#allocation14], 1
    %907 = vsyncpa [#allocation9], 1
    %s908 = scalar_lea.sflag [#allocation9], 1
    %909 = vsyncpa %s908, 1

</llo_original>
